<compile_context>
chip_gen: v5e
topology: v5e:2x2
jax: 0.10.0
libtpu: 0.0.40
codegen_flags: <defaults>
</compile_context>

<pallas_src>
import math
import random
import functools

import numpy as np
import jax
import jax.numpy as jnp
from jax import lax
from jax.experimental import pallas as pl
from jax.experimental.pallas import tpu as pltpu

LRELU_SLOPE = 0.2
ACT_GAIN = math.sqrt(2.0)  # StyleGAN applies sqrt(2) activation gain after lrelu


def _round_up(x, m):
    return (x + m - 1) // m * m


def _lrelu(x):
    return jnp.where(x >= 0.0, x, LRELU_SLOPE * x) * ACT_GAIN


# --------------------------------------------------------------------------- #
# Pallas kernels
# --------------------------------------------------------------------------- #
def _mapping_kernel(z_ref, w_ref, b_ref, o_ref, *, n_layers, true_f):
    """PixelwiseNormalization + chain of equalized-lr dense + lrelu layers.

    z: [Np, Fp] f32 (zero padded to (8,128)-aligned), w: [L, Fp, Fp] bf16,
    b: [L, 1, Fp] f32.  Padded lanes stay exactly zero through the chain.
    """
    x = z_ref[...].astype(jnp.float32)
    # PixelwiseNormalization over the true feature count (padded lanes are 0).
    x = x * lax.rsqrt(jnp.sum(x * x, axis=-1, keepdims=True) * (1.0 / true_f) + 1e-8)
    for l in range(n_layers):
        y = jnp.dot(x.astype(jnp.bfloat16), w_ref[l],
                    preferred_element_type=jnp.float32) + b_ref[l]
        x = _lrelu(y)
    o_ref[...] = x


def mapping_forward(z, w_stack, b_stack):
    n, f = z.shape
    L, fp, _ = w_stack.shape
    npad = _round_up(max(n, 8), 8)
    zp = jnp.pad(z.astype(jnp.float32), ((0, npad - n), (0, fp - f)))
    out = pl.pallas_call(
        functools.partial(_mapping_kernel, n_layers=L, true_f=f),
        out_shape=jax.ShapeDtypeStruct((npad, fp), jnp.float32),
        grid=(1,),
        in_specs=[
            pl.BlockSpec((npad, fp), lambda i: (0, 0)),
            pl.BlockSpec((L, fp, fp), lambda i: (0, 0, 0)),
            pl.BlockSpec((L, 1, fp), lambda i: (0, 0, 0)),
        ],
        out_specs=pl.BlockSpec((npad, fp), lambda i: (0, 0)),
        compiler_params=pltpu.CompilerParams(dimension_semantics=("arbitrary",)),
    )(zp, w_stack, b_stack)
    return out[:n, :f]


def _mod_conv3x3_kernel(strength_ref, x_ref, style_ref, noise_ref,
                        wrow_ref, wsq_ref, b_ref, o_ref, xpad_ref,
                        *, H, W, demodulate):
    """Style modulated/demodulated 3x3 conv + noise + bias + lrelu, one sample.

      x     : [1, H, W, Cin]      bf16 (un-padded activation)
      style : [1, 1, Cin]         f32
      noise : [1, H, W, 1]        f32 (lane-singleton channel)
      wrow  : [3, 3*Cin, Cout]    bf16 (per-ky row weights, kx-major then ci)
      wsq   : [Cin, Cout]         f32  (sum_{ky,kx} w^2 from f32 master weights)
      b     : [1, Cout]           f32
      strength : (1,) f32 in SMEM
      xpad_ref : VMEM scratch [H+2, W+2, Cin] bf16
    """
    cout = wrow_ref.shape[-1]
    s = style_ref[0]                                               # [1, Cin] f32

    # Modulate the input once (channel = lanes -> cheap broadcast).
    xm = x_ref[0] * s.astype(jnp.bfloat16)[:, None, :]             # [H, W, Cin] bf16

    # Halo zero-pad in VMEM scratch (no HBM round trip).
    xpad_ref[...] = jnp.zeros((H + 2, W + 2, xm.shape[-1]), jnp.bfloat16)
    xpad_ref[1:H + 1, 1:W + 1, :] = xm
    xp = xpad_ref[...]

    # Three kx-shifted slabs, built once and reused across ky (3 sublane shifts
    # instead of 9); concatenated along channels so K = 3*Cin per MXU dot.
    xcat = jnp.concatenate(
        [xp[:, 0:W, :], xp[:, 1:W + 1, :], xp[:, 2:W + 2, :]], axis=-1)   # [H+2, W, 3*Cin]

    acc = jnp.zeros((H, W, cout), jnp.float32)
    for ky in range(3):                      # adjacent acc += dot(...) (MRB-friendly)
        acc = acc + lax.dot_general(
            xcat[ky:ky + H], wrow_ref[ky],
            dimension_numbers=(((2,), (0,)), ((), ())),
            preferred_element_type=jnp.float32)

    if demodulate:
        d = lax.rsqrt(jnp.dot(s * s, wsq_ref[...],
                              preferred_element_type=jnp.float32) + 1e-8)  # [1, Cout]
        acc = acc * d                                           # lane broadcast, f32

    acc = acc + strength_ref[0] * noise_ref[0]                  # [H, W, 1] -> lanes
    acc = acc + b_ref[...][None]
    acc = _lrelu(acc)                                           # f32 epilogue (v5e VPU)
    o_ref[0] = acc.astype(o_ref.dtype)


def mod_conv3x3(x, style, noise, strength, w_rows, wsq, b, demodulate=True):
    n, h, wd, cin = x.shape
    cout = w_rows.shape[-1]
    kern = functools.partial(_mod_conv3x3_kernel, H=h, W=wd, demodulate=demodulate)
    # TODO(synk): add an H-strip grid axis (with halo) for real resolutions so the
    #             working set stays within v7x's 64 MiB VMEM.
    return pl.pallas_call(
        kern,
        out_shape=jax.ShapeDtypeStruct((n, h, wd, cout), jnp.bfloat16),
        grid=(n,),
        in_specs=[
            pl.BlockSpec(memory_space=pltpu.MemorySpace.SMEM),           # strength (1,)
            pl.BlockSpec((1, h, wd, cin), lambda i: (i, 0, 0, 0)),       # x
            pl.BlockSpec((1, 1, cin), lambda i: (i, 0, 0)),              # style
            pl.BlockSpec((1, h, wd, 1), lambda i: (i, 0, 0, 0)),         # noise
            pl.BlockSpec((3, 3 * cin, cout), lambda i: (0, 0, 0)),       # w_rows
            pl.BlockSpec((cin, cout), lambda i: (0, 0)),                 # wsq
            pl.BlockSpec((1, cout), lambda i: (0, 0)),                   # b
        ],
        out_specs=pl.BlockSpec((1, h, wd, cout), lambda i: (i, 0, 0, 0)),
        scratch_shapes=[pltpu.VMEM((h + 2, wd + 2, cin), jnp.bfloat16)],
        compiler_params=pltpu.CompilerParams(
            dimension_semantics=("parallel",),
            vmem_limit_bytes=64 * 1024 * 1024),
    )(strength, x, style, noise, w_rows, wsq, b)


def _torgb_kernel(x_ref, style_ref, w_ref, b_ref, *rest, has_skip):
    """Fused: style-modulated 1x1 conv (no demod) + bias (+ skip add), one sample.

    x: [1, H, W, C] bf16, style: [1, 1, C] f32, w: [C, nc] bf16, b: [1, nc] f32,
    skip (optional): [1, H, W, nc] f32.
    """
    if has_skip:
        skip_ref, o_ref = rest
    else:
        (o_ref,) = rest
    s = style_ref[0].astype(jnp.bfloat16)                         # [1, C]
    xm = x_ref[0] * s[:, None, :]                                  # modulate input (lane bcast)
    y = lax.dot_general(xm, w_ref[...],
                        dimension_numbers=(((2,), (0,)), ((), ())),
                        preferred_element_type=jnp.float32)
    y = y + b_ref[...][None]
    if has_skip:
        y = y + skip_ref[0]
    o_ref[0] = y


def torgb_add(x, style, w, b, skip=None):
    n, h, wd, c = x.shape
    nc = w.shape[-1]
    has_skip = skip is not None
    # TODO(synk): nc=3 output blocks are lane-sparse (masked vst); a packed /
    #             planar skip layout + fused final transpose is the next step.
    in_specs = [
        pl.BlockSpec((1, h, wd, c), lambda i: (i, 0, 0, 0)),
        pl.BlockSpec((1, 1, c), lambda i: (i, 0, 0)),
        pl.BlockSpec((c, nc), lambda i: (0, 0)),
        pl.BlockSpec((1, nc), lambda i: (0, 0)),
    ]
    args = [x, style, w, b]
    if has_skip:
        in_specs.append(pl.BlockSpec((1, h, wd, nc), lambda i: (i, 0, 0, 0)))
        args.append(skip)
    return pl.pallas_call(
        functools.partial(_torgb_kernel, has_skip=has_skip),
        out_shape=jax.ShapeDtypeStruct((n, h, wd, nc), jnp.float32),
        grid=(n,),
        in_specs=in_specs,
        out_specs=pl.BlockSpec((1, h, wd, nc), lambda i: (i, 0, 0, 0)),
        compiler_params=pltpu.CompilerParams(dimension_semantics=("parallel",)),
    )(*args)


# --------------------------------------------------------------------------- #
# Parameter init + forward (plain-JAX glue)
# --------------------------------------------------------------------------- #
def _nf(stage, fmap_base, fmap_decay, fmap_min, fmap_max):
    return int(np.clip(int(fmap_base / 2.0 ** (stage * fmap_decay)), fmap_min, fmap_max))


def _dense_w(key, fan_in, fan_out, gain):
    # equalized-lr: effective weight = N(0,1) * gain / sqrt(fan_in)
    return jax.random.normal(key, (fan_in, fan_out), jnp.float32) * (gain / math.sqrt(fan_in))


def init_generator_params(key, *, resolution, latent_size, dlatent_size,
                          mapping_layers, mapping_fmaps, num_channels,
                          fmap_base, fmap_decay, fmap_min, fmap_max):
    assert latent_size == dlatent_size == mapping_fmaps, \
        "mapping kernel stacks layer weights; keep latent/dlatent/fmaps equal"
    res_log2 = int(np.log2(resolution))
    nf = lambda s: _nf(s, fmap_base, fmap_decay, fmap_min, fmap_max)
    keys = iter(jax.random.split(key, 256))

    # ---- mapping network: L stacked equalized-lr dense layers, padded to (8,128)
    F = mapping_fmaps
    Fp = _round_up(F, 128)
    w_list = []
    for _ in range(mapping_layers):
        wl = _dense_w(next(keys), F, F, ACT_GAIN)
        w_list.append(jnp.pad(wl, ((0, Fp - F), (0, Fp - F))))
    w_stack = jnp.stack(w_list).astype(jnp.bfloat16)
    b_stack = jnp.zeros((mapping_layers, 1, Fp), jnp.float32)

    def conv_params(cin, cout):
        aw = _dense_w(next(keys), dlatent_size, cin, 1.0)
        w32 = (jax.random.normal(next(keys), (3, 3, cin, cout), jnp.float32)
               * (ACT_GAIN / math.sqrt(9 * cin)))                 # f32 master copy
        return dict(
            affine_w=aw,
            affine_b=jnp.ones((cin,), jnp.float32),               # style bias init = 1
            w_rows=w32.reshape(3, 3 * cin, cout).astype(jnp.bfloat16),
            wsq=jnp.sum(w32 * w32, axis=(0, 1)),                  # [cin, cout] f32
            b=jnp.zeros((1, cout), jnp.float32),
            noise_strength=jnp.zeros((1,), jnp.float32),          # StyleGAN init: 0
        )

    def torgb_params(cin):
        return dict(
            affine_w=_dense_w(next(keys), dlatent_size, cin, 1.0),
            affine_b=jnp.ones((cin,), jnp.float32),
            w=(jax.random.normal(next(keys), (cin, num_channels), jnp.float32)
               * (1.0 / math.sqrt(cin))).astype(jnp.bfloat16),
            b=jnp.zeros((1, num_channels), jnp.float32),
        )

    params = dict(
        resolution_log2=res_log2,
        n_latent=res_log2 * 2 - 2,
        num_channels=num_channels,
        mapping=dict(w=w_stack, b=b_stack),
        const=jax.random.normal(next(keys), (4, 4, nf(1)), jnp.float32).astype(jnp.bfloat16),
        init_conv=conv_params(nf(1), nf(1)),
        init_torgb=torgb_params(nf(1)),
        blocks=[dict(res=res,
                     conv0=conv_params(nf(res - 2), nf(res - 1)),
                     conv1=conv_params(nf(res - 1), nf(res - 1)),
                     torgb=torgb_params(nf(res - 1)))
                for res in range(3, res_log2 + 1)],
    )
    return params


def _upsample2x(x):
    # TODO(synk): StyleGAN2 uses a fused upsample-conv with a blur FIR filter;
    #             nearest-neighbor upsample (XLA glue) is used here.  Folding it
    #             into the conv kernel needs a sublane-merging reshape in Mosaic,
    #             left as a follow-up.
    return jnp.repeat(jnp.repeat(x, 2, axis=1), 2, axis=2)


def _style_entries(params):
    entries = [params["init_conv"], params["init_torgb"]]
    layer_ids = [0, 1]
    for blk in params["blocks"]:
        res = blk["res"]
        entries += [blk["conv0"], blk["conv1"], blk["torgb"]]
        layer_ids += [2 * res - 5, 2 * res - 4, 2 * res - 3]
    return entries, layer_ids


def _compute_all_styles(params, dlatents):
    """One batched matmul for every per-layer style (instead of many tiny ones)."""
    entries, layer_ids = _style_entries(params)
    cins = [int(e["affine_w"].shape[1]) for e in entries]
    cmax = max(cins)
    A = jnp.stack([jnp.pad(e["affine_w"], ((0, 0), (0, cmax - c)))
                   for e, c in zip(entries, cins)])                     # [S, D, cmax]
    Bc = jnp.stack([jnp.pad(e["affine_b"], (0, cmax - c))
                    for e, c in zip(entries, cins)])                    # [S, cmax]
    dl_sel = dlatents[:, jnp.array(layer_ids, dtype=jnp.int32), :]      # [N, S, D]
    styles = jnp.einsum("nsd,sdc->nsc", dl_sel, A) + Bc[None]           # [N, S, cmax]
    return styles, cins


def synthesis_forward(params, dlatents, rng):
    n = dlatents.shape[0]
    styles, cins = _compute_all_styles(params, dlatents)

    def style_of(si):
        return styles[:, si:si + 1, :cins[si]]          # [N, 1, cin]

    def run_conv(x, si, p, rng):
        rng, k = jax.random.split(rng)
        h = x.shape[1]
        noise = jax.random.normal(k, (n, h, x.shape[2], 1), jnp.float32)
        y = mod_conv3x3(x, style_of(si), noise, p["noise_strength"],
                        p["w_rows"], p["wsq"], p["b"], demodulate=True)
        return y, rng

    # init block (4x4)
    x = jnp.broadcast_to(params["const"][None], (n,) + params["const"].shape)
    si = 0
    x, rng = run_conv(x, si, params["init_conv"], rng); si += 1
    skip = torgb_add(x, style_of(si), params["init_torgb"]["w"],
                     params["init_torgb"]["b"], skip=None); si += 1

    # progressive blocks ('skip' architecture)
    for blk in params["blocks"]:
        x = _upsample2x(x)
        x, rng = run_conv(x, si, blk["conv0"], rng); si += 1
        x, rng = run_conv(x, si, blk["conv1"], rng); si += 1
        skip = torgb_add(x, style_of(si), blk["torgb"]["w"], blk["torgb"]["b"],
                         skip=_upsample2x(skip)); si += 1
    return skip  # NHWC, f32


def generator_forward(params, latents_in, noise_rng):
    """latents_in: list of [N, latent_size] arrays (style mixing if >1)."""
    n_latent = params["n_latent"]
    # batch all style-mixing latents through a single mapping call
    z_all = jnp.concatenate(latents_in, axis=0)
    w_all = mapping_forward(z_all, params["mapping"]["w"], params["mapping"]["b"])
    ws = jnp.split(w_all, len(latents_in), axis=0)
    # TruncationTrick(threshold=1.0) == identity; broadcast to all layers.
    dlats = [jnp.broadcast_to(w[:, None, :], (w.shape[0], n_latent, w.shape[1]))
             for w in ws]
    if len(dlats) < 2:
        dlatents_in = dlats[0]
    else:
        # TODO(synk): crossover point is a trace-time constant (torch re-draws per call).
        inject_id = random.Random(0).randint(1, n_latent - 1)
        dlatents_in = jnp.concatenate(
            [dlats[0][:, :inject_id], dlats[1][:, inject_id:]], axis=1)
    imgs_nhwc = synthesis_forward(params, dlatents_in, noise_rng)
    # TODO(synk): return_dlatents=True path (autograd.grad wrt dlatents) not implemented.
    # TODO(synk): final NHWC->NCHW transpose kept as XLA glue.
    return jnp.transpose(imgs_nhwc, (0, 3, 1, 2))  # -> NCHW like PyTorch


# --------------------------------------------------------------------------- #
if __name__ == "__main__":
    # small config: resolution 16 -> n_latent = 6, latent/dlatent = 32
    cfg = dict(resolution=16, latent_size=32, dlatent_size=32,
               mapping_layers=8, mapping_fmaps=32, num_channels=3,
               fmap_base=64, fmap_decay=1.0, fmap_min=1, fmap_max=32)

    key = jax.random.PRNGKey(0)
    pkey, zkey, nkey = jax.random.split(key, 3)
    params = init_generator_params(pkey, **cfg)

    batch = 2
    z = jax.random.normal(zkey, (batch, cfg["latent_size"]), jnp.float32)

    imgs = generator_forward(params, [z], nkey)
    imgs = jax.block_until_ready(imgs)

    assert imgs.shape == (batch, cfg["num_channels"], cfg["resolution"], cfg["resolution"])
    assert jnp.all(jnp.isfinite(imgs))
    print("KERNEL_OK")
</pallas_src>

<mosaic_0001>
module attributes {stable_mosaic.version = 11 : i64} {
  func.func @_mapping_kernel(%arg0: i32, %arg1: memref<8x128xf32, #tpu.memory_space<vmem>>, %arg2: memref<8x128x128xbf16, #tpu.memory_space<vmem>>, %arg3: memref<8x1x128xf32, #tpu.memory_space<vmem>>, %arg4: memref<8x128xf32, #tpu.memory_space<vmem>>) attributes {dimension_semantics = [#tpu.dimension_semantics<arbitrary>], iteration_bounds = array<i64: 1>, scalar_prefetch = 0 : i64, scratch_operands = 0 : i64, tpu.core_type = #tpu.core_type<tc>, window_params = [{pipeline_mode = #tpu.pipeline_mode<synchronous>, transform_indices = @transform_0, window_bounds = array<i64: 8, 128>}, {pipeline_mode = #tpu.pipeline_mode<synchronous>, transform_indices = @transform_1, window_bounds = array<i64: 8, 128, 128>}, {pipeline_mode = #tpu.pipeline_mode<synchronous>, transform_indices = @transform_2, window_bounds = array<i64: 8, 1, 128>}, {pipeline_mode = #tpu.pipeline_mode<synchronous>, transform_indices = @transform_3, window_bounds = array<i64: 8, 128>}]} {
    %c0 = arith.constant 0 : index
    %c0_0 = arith.constant 0 : index
    %0 = vector.load %arg1[%c0, %c0_0] : memref<8x128xf32, #tpu.memory_space<vmem>>, vector<8x128xf32>
    %1 = arith.mulf %0, %0 : vector<8x128xf32>
    %cst = arith.constant dense<0.000000e+00> : vector<8xf32>
    %2 = vector.multi_reduction <add>, %1, %cst [1] : vector<8x128xf32> to vector<8xf32>
    %3 = vector.shape_cast %2 : vector<8xf32> to vector<8x1xf32>
    %cst_1 = arith.constant 3.125000e-02 : f32
    %4 = vector.broadcast %cst_1 : f32 to vector<8x1xf32>
    %5 = arith.mulf %3, %4 : vector<8x1xf32>
    %cst_2 = arith.constant 9.99999993E-9 : f32
    %6 = vector.broadcast %cst_2 : f32 to vector<8x1xf32>
    %7 = arith.addf %5, %6 : vector<8x1xf32>
    %8 = math.rsqrt %7 : vector<8x1xf32>
    %9 = vector.broadcast %8 : vector<8x1xf32> to vector<8x128xf32>
    %10 = arith.mulf %0, %9 : vector<8x128xf32>
    %11 = arith.truncf %10 : vector<8x128xf32> to vector<8x128xbf16>
    %c0_3 = arith.constant 0 : index
    %c0_4 = arith.constant 0 : index
    %c0_5 = arith.constant 0 : index
    %12 = vector.load %arg2[%c0_3, %c0_4, %c0_5] : memref<8x128x128xbf16, #tpu.memory_space<vmem>>, vector<1x128x128xbf16>
    %13 = vector.shape_cast %12 : vector<1x128x128xbf16> to vector<128x128xbf16>
    %cst_6 = arith.constant dense<0.000000e+00> : vector<8x128xf32>
    %14 = tpu.matmul %11, %13, %cst_6 {dimension_numbers = #tpu.dot_dimension_numbers<[1], [0], [0], [1], [0, 0, 1, 1], [], []>} : vector<8x128xbf16>, vector<128x128xbf16>, vector<8x128xf32> -> vector<8x128xf32>
    %c0_7 = arith.constant 0 : index
    %c0_8 = arith.constant 0 : index
    %c0_9 = arith.constant 0 : index
    %15 = vector.load %arg3[%c0_7, %c0_8, %c0_9] : memref<8x1x128xf32, #tpu.memory_space<vmem>>, vector<1x1x128xf32>
    %16 = vector.shape_cast %15 : vector<1x1x128xf32> to vector<1x128xf32>
    %17 = vector.broadcast %16 : vector<1x128xf32> to vector<8x128xf32>
    %18 = arith.addf %14, %17 : vector<8x128xf32>
    %cst_10 = arith.constant 0.000000e+00 : f32
    %19 = vector.broadcast %cst_10 : f32 to vector<8x128xf32>
    %20 = arith.cmpf oge, %18, %19 : vector<8x128xf32>
    %cst_11 = arith.constant 2.000000e-01 : f32
    %21 = vector.broadcast %cst_11 : f32 to vector<8x128xf32>
    %22 = arith.mulf %21, %18 : vector<8x128xf32>
    %23 = arith.select %20, %18, %22 : vector<8x128xi1>, vector<8x128xf32>
    %cst_12 = arith.constant 1.41421354 : f32
    %24 = vector.broadcast %cst_12 : f32 to vector<8x128xf32>
    %25 = arith.mulf %23, %24 : vector<8x128xf32>
    %26 = arith.truncf %25 : vector<8x128xf32> to vector<8x128xbf16>
    %c1 = arith.constant 1 : index
    %c0_13 = arith.constant 0 : index
    %c0_14 = arith.constant 0 : index
    %27 = vector.load %arg2[%c1, %c0_13, %c0_14] : memref<8x128x128xbf16, #tpu.memory_space<vmem>>, vector<1x128x128xbf16>
    %28 = vector.shape_cast %27 : vector<1x128x128xbf16> to vector<128x128xbf16>
    %cst_15 = arith.constant dense<0.000000e+00> : vector<8x128xf32>
    %29 = tpu.matmul %26, %28, %cst_15 {dimension_numbers = #tpu.dot_dimension_numbers<[1], [0], [0], [1], [0, 0, 1, 1], [], []>} : vector<8x128xbf16>, vector<128x128xbf16>, vector<8x128xf32> -> vector<8x128xf32>
    %c1_16 = arith.constant 1 : index
    %c0_17 = arith.constant 0 : index
    %c0_18 = arith.constant 0 : index
    %30 = vector.load %arg3[%c1_16, %c0_17, %c0_18] : memref<8x1x128xf32, #tpu.memory_space<vmem>>, vector<1x1x128xf32>
    %31 = vector.shape_cast %30 : vector<1x1x128xf32> to vector<1x128xf32>
    %32 = vector.broadcast %31 : vector<1x128xf32> to vector<8x128xf32>
    %33 = arith.addf %29, %32 : vector<8x128xf32>
    %cst_19 = arith.constant 0.000000e+00 : f32
    %34 = vector.broadcast %cst_19 : f32 to vector<8x128xf32>
    %35 = arith.cmpf oge, %33, %34 : vector<8x128xf32>
    %cst_20 = arith.constant 2.000000e-01 : f32
    %36 = vector.broadcast %cst_20 : f32 to vector<8x128xf32>
    %37 = arith.mulf %36, %33 : vector<8x128xf32>
    %38 = arith.select %35, %33, %37 : vector<8x128xi1>, vector<8x128xf32>
    %cst_21 = arith.constant 1.41421354 : f32
    %39 = vector.broadcast %cst_21 : f32 to vector<8x128xf32>
    %40 = arith.mulf %38, %39 : vector<8x128xf32>
    %41 = arith.truncf %40 : vector<8x128xf32> to vector<8x128xbf16>
    %c2 = arith.constant 2 : index
    %c0_22 = arith.constant 0 : index
    %c0_23 = arith.constant 0 : index
    %42 = vector.load %arg2[%c2, %c0_22, %c0_23] : memref<8x128x128xbf16, #tpu.memory_space<vmem>>, vector<1x128x128xbf16>
    %43 = vector.shape_cast %42 : vector<1x128x128xbf16> to vector<128x128xbf16>
    %cst_24 = arith.constant dense<0.000000e+00> : vector<8x128xf32>
    %44 = tpu.matmul %41, %43, %cst_24 {dimension_numbers = #tpu.dot_dimension_numbers<[1], [0], [0], [1], [0, 0, 1, 1], [], []>} : vector<8x128xbf16>, vector<128x128xbf16>, vector<8x128xf32> -> vector<8x128xf32>
    %c2_25 = arith.constant 2 : index
    %c0_26 = arith.constant 0 : index
    %c0_27 = arith.constant 0 : index
    %45 = vector.load %arg3[%c2_25, %c0_26, %c0_27] : memref<8x1x128xf32, #tpu.memory_space<vmem>>, vector<1x1x128xf32>
    %46 = vector.shape_cast %45 : vector<1x1x128xf32> to vector<1x128xf32>
    %47 = vector.broadcast %46 : vector<1x128xf32> to vector<8x128xf32>
    %48 = arith.addf %44, %47 : vector<8x128xf32>
    %cst_28 = arith.constant 0.000000e+00 : f32
    %49 = vector.broadcast %cst_28 : f32 to vector<8x128xf32>
    %50 = arith.cmpf oge, %48, %49 : vector<8x128xf32>
    %cst_29 = arith.constant 2.000000e-01 : f32
    %51 = vector.broadcast %cst_29 : f32 to vector<8x128xf32>
    %52 = arith.mulf %51, %48 : vector<8x128xf32>
    %53 = arith.select %50, %48, %52 : vector<8x128xi1>, vector<8x128xf32>
    %cst_30 = arith.constant 1.41421354 : f32
    %54 = vector.broadcast %cst_30 : f32 to vector<8x128xf32>
    %55 = arith.mulf %53, %54 : vector<8x128xf32>
    %56 = arith.truncf %55 : vector<8x128xf32> to vector<8x128xbf16>
    %c3 = arith.constant 3 : index
    %c0_31 = arith.constant 0 : index
    %c0_32 = arith.constant 0 : index
    %57 = vector.load %arg2[%c3, %c0_31, %c0_32] : memref<8x128x128xbf16, #tpu.memory_space<vmem>>, vector<1x128x128xbf16>
    %58 = vector.shape_cast %57 : vector<1x128x128xbf16> to vector<128x128xbf16>
    %cst_33 = arith.constant dense<0.000000e+00> : vector<8x128xf32>
    %59 = tpu.matmul %56, %58, %cst_33 {dimension_numbers = #tpu.dot_dimension_numbers<[1], [0], [0], [1], [0, 0, 1, 1], [], []>} : vector<8x128xbf16>, vector<128x128xbf16>, vector<8x128xf32> -> vector<8x128xf32>
    %c3_34 = arith.constant 3 : index
    %c0_35 = arith.constant 0 : index
    %c0_36 = arith.constant 0 : index
    %60 = vector.load %arg3[%c3_34, %c0_35, %c0_36] : memref<8x1x128xf32, #tpu.memory_space<vmem>>, vector<1x1x128xf32>
    %61 = vector.shape_cast %60 : vector<1x1x128xf32> to vector<1x128xf32>
    %62 = vector.broadcast %61 : vector<1x128xf32> to vector<8x128xf32>
    %63 = arith.addf %59, %62 : vector<8x128xf32>
    %cst_37 = arith.constant 0.000000e+00 : f32
    %64 = vector.broadcast %cst_37 : f32 to vector<8x128xf32>
    %65 = arith.cmpf oge, %63, %64 : vector<8x128xf32>
    %cst_38 = arith.constant 2.000000e-01 : f32
    %66 = vector.broadcast %cst_38 : f32 to vector<8x128xf32>
    %67 = arith.mulf %66, %63 : vector<8x128xf32>
    %68 = arith.select %65, %63, %67 : vector<8x128xi1>, vector<8x128xf32>
    %cst_39 = arith.constant 1.41421354 : f32
    %69 = vector.broadcast %cst_39 : f32 to vector<8x128xf32>
    %70 = arith.mulf %68, %69 : vector<8x128xf32>
    %71 = arith.truncf %70 : vector<8x128xf32> to vector<8x128xbf16>
    %c4 = arith.constant 4 : index
    %c0_40 = arith.constant 0 : index
    %c0_41 = arith.constant 0 : index
    %72 = vector.load %arg2[%c4, %c0_40, %c0_41] : memref<8x128x128xbf16, #tpu.memory_space<vmem>>, vector<1x128x128xbf16>
    %73 = vector.shape_cast %72 : vector<1x128x128xbf16> to vector<128x128xbf16>
    %cst_42 = arith.constant dense<0.000000e+00> : vector<8x128xf32>
    %74 = tpu.matmul %71, %73, %cst_42 {dimension_numbers = #tpu.dot_dimension_numbers<[1], [0], [0], [1], [0, 0, 1, 1], [], []>} : vector<8x128xbf16>, vector<128x128xbf16>, vector<8x128xf32> -> vector<8x128xf32>
    %c4_43 = arith.constant 4 : index
    %c0_44 = arith.constant 0 : index
    %c0_45 = arith.constant 0 : index
    %75 = vector.load %arg3[%c4_43, %c0_44, %c0_45] : memref<8x1x128xf32, #tpu.memory_space<vmem>>, vector<1x1x128xf32>
    %76 = vector.shape_cast %75 : vector<1x1x128xf32> to vector<1x128xf32>
    %77 = vector.broadcast %76 : vector<1x128xf32> to vector<8x128xf32>
    %78 = arith.addf %74, %77 : vector<8x128xf32>
    %cst_46 = arith.constant 0.000000e+00 : f32
    %79 = vector.broadcast %cst_46 : f32 to vector<8x128xf32>
    %80 = arith.cmpf oge, %78, %79 : vector<8x128xf32>
    %cst_47 = arith.constant 2.000000e-01 : f32
    %81 = vector.broadcast %cst_47 : f32 to vector<8x128xf32>
    %82 = arith.mulf %81, %78 : vector<8x128xf32>
    %83 = arith.select %80, %78, %82 : vector<8x128xi1>, vector<8x128xf32>
    %cst_48 = arith.constant 1.41421354 : f32
    %84 = vector.broadcast %cst_48 : f32 to vector<8x128xf32>
    %85 = arith.mulf %83, %84 : vector<8x128xf32>
    %86 = arith.truncf %85 : vector<8x128xf32> to vector<8x128xbf16>
    %c5 = arith.constant 5 : index
    %c0_49 = arith.constant 0 : index
    %c0_50 = arith.constant 0 : index
    %87 = vector.load %arg2[%c5, %c0_49, %c0_50] : memref<8x128x128xbf16, #tpu.memory_space<vmem>>, vector<1x128x128xbf16>
    %88 = vector.shape_cast %87 : vector<1x128x128xbf16> to vector<128x128xbf16>
    %cst_51 = arith.constant dense<0.000000e+00> : vector<8x128xf32>
    %89 = tpu.matmul %86, %88, %cst_51 {dimension_numbers = #tpu.dot_dimension_numbers<[1], [0], [0], [1], [0, 0, 1, 1], [], []>} : vector<8x128xbf16>, vector<128x128xbf16>, vector<8x128xf32> -> vector<8x128xf32>
    %c5_52 = arith.constant 5 : index
    %c0_53 = arith.constant 0 : index
    %c0_54 = arith.constant 0 : index
    %90 = vector.load %arg3[%c5_52, %c0_53, %c0_54] : memref<8x1x128xf32, #tpu.memory_space<vmem>>, vector<1x1x128xf32>
    %91 = vector.shape_cast %90 : vector<1x1x128xf32> to vector<1x128xf32>
    %92 = vector.broadcast %91 : vector<1x128xf32> to vector<8x128xf32>
    %93 = arith.addf %89, %92 : vector<8x128xf32>
    %cst_55 = arith.constant 0.000000e+00 : f32
    %94 = vector.broadcast %cst_55 : f32 to vector<8x128xf32>
    %95 = arith.cmpf oge, %93, %94 : vector<8x128xf32>
    %cst_56 = arith.constant 2.000000e-01 : f32
    %96 = vector.broadcast %cst_56 : f32 to vector<8x128xf32>
    %97 = arith.mulf %96, %93 : vector<8x128xf32>
    %98 = arith.select %95, %93, %97 : vector<8x128xi1>, vector<8x128xf32>
    %cst_57 = arith.constant 1.41421354 : f32
    %99 = vector.broadcast %cst_57 : f32 to vector<8x128xf32>
    %100 = arith.mulf %98, %99 : vector<8x128xf32>
    %101 = arith.truncf %100 : vector<8x128xf32> to vector<8x128xbf16>
    %c6 = arith.constant 6 : index
    %c0_58 = arith.constant 0 : index
    %c0_59 = arith.constant 0 : index
    %102 = vector.load %arg2[%c6, %c0_58, %c0_59] : memref<8x128x128xbf16, #tpu.memory_space<vmem>>, vector<1x128x128xbf16>
    %103 = vector.shape_cast %102 : vector<1x128x128xbf16> to vector<128x128xbf16>
    %cst_60 = arith.constant dense<0.000000e+00> : vector<8x128xf32>
    %104 = tpu.matmul %101, %103, %cst_60 {dimension_numbers = #tpu.dot_dimension_numbers<[1], [0], [0], [1], [0, 0, 1, 1], [], []>} : vector<8x128xbf16>, vector<128x128xbf16>, vector<8x128xf32> -> vector<8x128xf32>
    %c6_61 = arith.constant 6 : index
    %c0_62 = arith.constant 0 : index
    %c0_63 = arith.constant 0 : index
    %105 = vector.load %arg3[%c6_61, %c0_62, %c0_63] : memref<8x1x128xf32, #tpu.memory_space<vmem>>, vector<1x1x128xf32>
    %106 = vector.shape_cast %105 : vector<1x1x128xf32> to vector<1x128xf32>
    %107 = vector.broadcast %106 : vector<1x128xf32> to vector<8x128xf32>
    %108 = arith.addf %104, %107 : vector<8x128xf32>
    %cst_64 = arith.constant 0.000000e+00 : f32
    %109 = vector.broadcast %cst_64 : f32 to vector<8x128xf32>
    %110 = arith.cmpf oge, %108, %109 : vector<8x128xf32>
    %cst_65 = arith.constant 2.000000e-01 : f32
    %111 = vector.broadcast %cst_65 : f32 to vector<8x128xf32>
    %112 = arith.mulf %111, %108 : vector<8x128xf32>
    %113 = arith.select %110, %108, %112 : vector<8x128xi1>, vector<8x128xf32>
    %cst_66 = arith.constant 1.41421354 : f32
    %114 = vector.broadcast %cst_66 : f32 to vector<8x128xf32>
    %115 = arith.mulf %113, %114 : vector<8x128xf32>
    %116 = arith.truncf %115 : vector<8x128xf32> to vector<8x128xbf16>
    %c7 = arith.constant 7 : index
    %c0_67 = arith.constant 0 : index
    %c0_68 = arith.constant 0 : index
    %117 = vector.load %arg2[%c7, %c0_67, %c0_68] : memref<8x128x128xbf16, #tpu.memory_space<vmem>>, vector<1x128x128xbf16>
    %118 = vector.shape_cast %117 : vector<1x128x128xbf16> to vector<128x128xbf16>
    %cst_69 = arith.constant dense<0.000000e+00> : vector<8x128xf32>
    %119 = tpu.matmul %116, %118, %cst_69 {dimension_numbers = #tpu.dot_dimension_numbers<[1], [0], [0], [1], [0, 0, 1, 1], [], []>} : vector<8x128xbf16>, vector<128x128xbf16>, vector<8x128xf32> -> vector<8x128xf32>
    %c7_70 = arith.constant 7 : index
    %c0_71 = arith.constant 0 : index
    %c0_72 = arith.constant 0 : index
    %120 = vector.load %arg3[%c7_70, %c0_71, %c0_72] : memref<8x1x128xf32, #tpu.memory_space<vmem>>, vector<1x1x128xf32>
    %121 = vector.shape_cast %120 : vector<1x1x128xf32> to vector<1x128xf32>
    %122 = vector.broadcast %121 : vector<1x128xf32> to vector<8x128xf32>
    %123 = arith.addf %119, %122 : vector<8x128xf32>
    %cst_73 = arith.constant 0.000000e+00 : f32
    %124 = vector.broadcast %cst_73 : f32 to vector<8x128xf32>
    %125 = arith.cmpf oge, %123, %124 : vector<8x128xf32>
    %cst_74 = arith.constant 2.000000e-01 : f32
    %126 = vector.broadcast %cst_74 : f32 to vector<8x128xf32>
    %127 = arith.mulf %126, %123 : vector<8x128xf32>
    %128 = arith.select %125, %123, %127 : vector<8x128xi1>, vector<8x128xf32>
    %cst_75 = arith.constant 1.41421354 : f32
    %129 = vector.broadcast %cst_75 : f32 to vector<8x128xf32>
    %130 = arith.mulf %128, %129 : vector<8x128xf32>
    %c0_76 = arith.constant 0 : index
    %c0_77 = arith.constant 0 : index
    %131 = vector.load %arg4[%c0_76, %c0_77] : memref<8x128xf32, #tpu.memory_space<vmem>>, vector<8x128xf32>
    tpu.vector_store %arg4[%c0_76, %c0_77], %130 {strides = array<i32>} : memref<8x128xf32, #tpu.memory_space<vmem>>, vector<8x128xf32>,
    return
  }
  func.func @transform_0(%arg0: i32) -> (i32, i32) {
    %c0_i32 = arith.constant 0 : i32
    %c0_i32_0 = arith.constant 0 : i32
    %c0_i32_1 = arith.constant 0 : i32
    return %c0_i32, %c0_i32_0 : i32, i32
  }
  func.func @transform_1(%arg0: i32) -> (i32, i32, i32) {
    %c0_i32 = arith.constant 0 : i32
    %c0_i32_0 = arith.constant 0 : i32
    %c0_i32_1 = arith.constant 0 : i32
    %c0_i32_2 = arith.constant 0 : i32
    return %c0_i32, %c0_i32_0, %c0_i32_1 : i32, i32, i32
  }
  func.func @transform_2(%arg0: i32) -> (i32, i32, i32) {
    %c0_i32 = arith.constant 0 : i32
    %c0_i32_0 = arith.constant 0 : i32
    %c0_i32_1 = arith.constant 0 : i32
    %c0_i32_2 = arith.constant 0 : i32
    return %c0_i32, %c0_i32_0, %c0_i32_1 : i32, i32, i32
  }
  func.func @transform_3(%arg0: i32) -> (i32, i32) {
    %c0_i32 = arith.constant 0 : i32
    %c0_i32_0 = arith.constant 0 : i32
    %c0_i32_1 = arith.constant 0 : i32
    return %c0_i32, %c0_i32_0 : i32, i32
  }
}

</mosaic_0001>

<llo_original>
// kernel: tpu_custom_call.1
$region0: #{tpu_custom_call.1}
  #allocation0 [shape = 'u32[]', space=smem, size = 0x4, offset = 0x4, fixed_abs, tag = 'smem constant byte address 0x4 - core index']
  #allocation1 [shape = 'u32[72,128]{1,0:T(1,128)}', space=vmem, size = 0x9000, scoped, tag = 'internal scratch']
  %s0 = inlined_call_operand.hbm [shape: f32[8,128], index: 0, kind: input, shape index: {}]
  %s1 = inlined_call_operand.hbm [shape: bf16[8,128,128], index: 1, kind: input, shape index: {}]
  %s2 = inlined_call_operand.hbm [shape: f32[8,1,128], index: 2, kind: input, shape index: {}]
  %s3 = inlined_call_operand.hbm [shape: f32[8,128], index: 3, kind: output, shape index: {}]
  %s4 = sld [smem:[#allocation0]]
  $region34: #{tpu_custom_call.1} parent=0
    _
  %s6 = ssub.s32 1, %s4
  %s7 = scalar_select 0, %s6, %s4
  $region1: #{tpu_custom_call.1} parent=0
    #allocation2 [shape = 'u8[4096]{0}', space=vmem, size = 0x1000, scoped, tag = 'input window, operand 0, single buffered']
    #allocation3 [shape = 's32[1]{0}', space=sflag, size = 0x4, scoped, tag = 'scoped memory for tpu_custom_call.1']
    #allocation4 [shape = 's32[1]{0}', space=sflag, size = 0x4, scoped, tag = 'scoped memory for tpu_custom_call.1']
    #allocation5 [shape = 'u8[262144]{0}', space=vmem, size = 0x40000, scoped, tag = 'input window, operand 1, single buffered']
    #allocation6 [shape = 's32[1]{0}', space=sflag, size = 0x4, scoped, tag = 'scoped memory for tpu_custom_call.1']
    #allocation7 [shape = 'u8[4096]{0}', space=vmem, size = 0x1000, scoped, tag = 'input window, operand 2, single buffered']
    #allocation8 [shape = 'u8[4096]{0}', space=vmem, size = 0x1000, scoped, tag = 'output window, operand 0, single buffered']
    %8 = vsyncpa [#allocation3], 0
    %9 = vsyncpa [#allocation6], 0
    %10 = vsyncpa [#allocation4], 0
    // Predicated region
    $region2: #{tpu_custom_call.1} parent=1 // pred_check
      _
    $region3: #{tpu_custom_call.1} parent=1 // pred_check_branch
      %12 = sbr.rel (0) target = $region5
    $region4: #{tpu_custom_call.1} parent=1 // pred_region
      %14 = vsyncadd [#allocation3], 0
      %s16 = sshll.u32 %s0, 4
      %s17 = int_to_ptr.hbm [resolvable:$true] %s16
      %s18 = sshll.u32 [#allocation2], 4
      %s19 = int_to_ptr.vmem [resolvable:$true] %s18
      %21 = dma.hbm_to_vmem [thread:$0]  %s17, 128, %s19, [#allocation3]
    $region5: #{tpu_custom_call.1} parent=1 // pred_fallthru
      _
    // Predicated region
    $region6: #{tpu_custom_call.1} parent=1 // pred_check
      _
    $region7: #{tpu_custom_call.1} parent=1 // pred_check_branch
      %23 = sbr.rel (0) target = $region9
    $region8: #{tpu_custom_call.1} parent=1 // pred_region
      %25 = vsyncadd [#allocation6], 0
      %s26 = sshll.u32 %s1, 4
      %s27 = int_to_ptr.hbm [resolvable:$true] %s26
      %s28 = sshll.u32 [#allocation5], 4
      %s29 = int_to_ptr.vmem [resolvable:$true] %s28
      %34 = dma.hbm_to_vmem [thread:$0]  %s27, 8192, %s29, [#allocation6], 64, 64, 4
    $region9: #{tpu_custom_call.1} parent=1 // pred_fallthru
      _
    // Predicated region
    $region10: #{tpu_custom_call.1} parent=1 // pred_check
      _
    $region11: #{tpu_custom_call.1} parent=1 // pred_check_branch
      %36 = sbr.rel (0) target = $region13
    $region12: #{tpu_custom_call.1} parent=1 // pred_region
      %38 = vsyncadd [#allocation6], 0
      %s39 = sshll.u32 %s2, 4
      %s40 = int_to_ptr.hbm [resolvable:$true] %s39
      %s41 = sshll.u32 [#allocation7], 4
      %s42 = int_to_ptr.vmem [resolvable:$true] %s41
      %47 = dma.hbm_to_vmem [thread:$0]  %s40, 128, %s42, [#allocation6], 16, 16, 1
    $region13: #{tpu_custom_call.1} parent=1 // pred_fallthru
      _
    // Predicated region
    $region14: #{tpu_custom_call.1} parent=1 // pred_check
      _
    $region15: #{tpu_custom_call.1} parent=1 // pred_check_branch
      %49 = sbr.rel (0) target = $region17
    $region16: #{tpu_custom_call.1} parent=1 // pred_region
      %51 = dma.done [#allocation3], 128
    $region17: #{tpu_custom_call.1} parent=1 // pred_fallthru
      _
    // Predicated region
    $region18: #{tpu_custom_call.1} parent=1 // pred_check
      _
    $region19: #{tpu_custom_call.1} parent=1 // pred_check_branch
      %53 = sbr.rel (0) target = $region21
    $region20: #{tpu_custom_call.1} parent=1 // pred_region
      %55 = dma.done [#allocation6], 8192
    $region21: #{tpu_custom_call.1} parent=1 // pred_fallthru
      _
    // Predicated region
    $region22: #{tpu_custom_call.1} parent=1 // pred_check
      _
    $region23: #{tpu_custom_call.1} parent=1 // pred_check_branch
      %57 = sbr.rel (0) target = $region25
    $region24: #{tpu_custom_call.1} parent=1 // pred_region
      %59 = dma.done [#allocation6], 128
    $region25: #{tpu_custom_call.1} parent=1 // pred_fallthru
      _
    %v60 = vld [vmem:[#allocation2] sm:$0xff]
    %v61 = vmul.f32 %v60, %v60
    %62 = vadd.xlane.f32.xlu0 %v61
    %v63 = vpop.xlane.xlu0 %62
    %v64 = vmul.f32 %v63, 0.03125
    %v65 = vadd.f32 %v64, 1e-08
    %v66 = vrsqrt.pop %v65
    %v67 = vmul.f32 %v66, %v65
    %v68 = vmul.f32 %v67, %v66
    %v69 = vmul.f32 0.5, %v68
    %v70 = vsub.f32 1.5, %v69
    %v71 = vmul.f32 %v66, %v70
    %vm72 = vweird.f32 %v65
    %vm73 = vweird.f32 %v66
    %vm74 = vmor %vm72, %vm73
    %v75 = vsel %vm74, %v66, %v71
    %v76 = vmul.f32 %v60, %v75
    %v77 = vpack.c.bf16 %v76, %v76
    %v78 = vld [vmem:[#allocation5] sm:$0xf]
    %v79 = vld [vmem:[#allocation5 + $0x4] sm:$0xf]
    %v80 = vld [vmem:[#allocation5 + $0x8] sm:$0xf]
    %v81 = vld [vmem:[#allocation5 + $0xc] sm:$0xf]
    %v82 = vld [vmem:[#allocation5 + $0x10] sm:$0xf]
    %v83 = vld [vmem:[#allocation5 + $0x14] sm:$0xf]
    %v84 = vld [vmem:[#allocation5 + $0x18] sm:$0xf]
    %v85 = vld [vmem:[#allocation5 + $0x1c] sm:$0xf]
    %v86 = vld [vmem:[#allocation5 + $0x20] sm:$0xf]
    %v87 = vld [vmem:[#allocation5 + $0x24] sm:$0xf]
    %v88 = vld [vmem:[#allocation5 + $0x28] sm:$0xf]
    %v89 = vld [vmem:[#allocation5 + $0x2c] sm:$0xf]
    %v90 = vld [vmem:[#allocation5 + $0x30] sm:$0xf]
    %v91 = vld [vmem:[#allocation5 + $0x34] sm:$0xf]
    %v92 = vld [vmem:[#allocation5 + $0x38] sm:$0xf]
    %v93 = vld [vmem:[#allocation5 + $0x3c] sm:$0xf]
    %v94 = vld [vmem:[#allocation7] sm:$0x1]
    %v96 = vperm.slane %v94, 0
    %v114 = vunpack.c.l.b16 %v78
    %v115 = vunpack.c.l.b16 %v79
    %v116 = vunpack.c.l.b16 %v80
    %v117 = vunpack.c.l.b16 %v81
    %v118 = vunpack.c.l.b16 %v82
    %v119 = vunpack.c.l.b16 %v83
    %v120 = vunpack.c.l.b16 %v84
    %v121 = vunpack.c.l.b16 %v85
    %v122 = vunpack.c.l.b16 %v86
    %v123 = vunpack.c.l.b16 %v87
    %v124 = vunpack.c.l.b16 %v88
    %v125 = vunpack.c.l.b16 %v89
    %v126 = vunpack.c.l.b16 %v90
    %v127 = vunpack.c.l.b16 %v91
    %v128 = vunpack.c.l.b16 %v92
    %v129 = vunpack.c.l.b16 %v93
    %v130 = vpack.c.b16 %v115, %v114
    %v131 = vpack.c.b16 %v117, %v116
    %v132 = vpack.c.b16 %v119, %v118
    %v133 = vpack.c.b16 %v121, %v120
    %v134 = vpack.c.b16 %v123, %v122
    %v135 = vpack.c.b16 %v125, %v124
    %v136 = vpack.c.b16 %v127, %v126
    %v137 = vpack.c.b16 %v129, %v128
    %146 = vmatpush.bf16.msra.mxu0 %v137
    %147 = vmatpush.bf16.msra.mxu0 %v136
    %148 = vmatpush.bf16.msra.mxu0 %v135
    %149 = vmatpush.bf16.msra.mxu0 %v134
    %150 = vmatpush.bf16.msra.mxu0 %v133
    %151 = vmatpush.bf16.msra.mxu0 %v132
    %152 = vmatpush.bf16.msra.mxu0 %v131
    %153 = vmatpush.bf16.msra.mxu0 %v130
    %154 = vmatmul.bf16.gmra.mxu0 %v77
    %v155 = vpop.f32.mrf.mxu0
    %v156 = vadd.f32 %v96, %v155
    %v157 = vpop.f32.mrf.mxu0
    %158 = vdwg.mxu0
    %vm159 = vcmp.ge.f32.partialorder %v156, 0.0
    %v160 = vmul.f32 %v156, 0.2
    %v161 = vsel %vm159, %v156, %v160
    %v162 = vmul.f32 %v161, 1.4142135
    %v163 = vpack.c.bf16 %v162, %v162
    %s164 = scalar_lea.vmem [#allocation5], 64
    %v165 = vld [vmem:[%s164] sm:$0xf]
    %v166 = vld [vmem:[%s164 + $0x4] sm:$0xf]
    %v167 = vld [vmem:[%s164 + $0x8] sm:$0xf]
    %v168 = vld [vmem:[%s164 + $0xc] sm:$0xf]
    %v169 = vld [vmem:[%s164 + $0x10] sm:$0xf]
    %v170 = vld [vmem:[%s164 + $0x14] sm:$0xf]
    %v171 = vld [vmem:[%s164 + $0x18] sm:$0xf]
    %v172 = vld [vmem:[%s164 + $0x1c] sm:$0xf]
    %v173 = vld [vmem:[%s164 + $0x20] sm:$0xf]
    %v174 = vld [vmem:[%s164 + $0x24] sm:$0xf]
    %v175 = vld [vmem:[%s164 + $0x28] sm:$0xf]
    %v176 = vld [vmem:[%s164 + $0x2c] sm:$0xf]
    %v177 = vld [vmem:[%s164 + $0x30] sm:$0xf]
    %v178 = vld [vmem:[%s164 + $0x34] sm:$0xf]
    %v179 = vld [vmem:[%s164 + $0x38] sm:$0xf]
    %v180 = vld [vmem:[%s164 + $0x3c] sm:$0xf]
    %s181 = scalar_lea.vmem [#allocation7], 1
    %v182 = vld [vmem:[%s181] sm:$0x1]
    %v184 = vperm.slane %v182, 0
    %v202 = vunpack.c.l.b16 %v165
    %v203 = vunpack.c.l.b16 %v166
    %v204 = vunpack.c.l.b16 %v167
    %v205 = vunpack.c.l.b16 %v168
    %v206 = vunpack.c.l.b16 %v169
    %v207 = vunpack.c.l.b16 %v170
    %v208 = vunpack.c.l.b16 %v171
    %v209 = vunpack.c.l.b16 %v172
    %v210 = vunpack.c.l.b16 %v173
    %v211 = vunpack.c.l.b16 %v174
    %v212 = vunpack.c.l.b16 %v175
    %v213 = vunpack.c.l.b16 %v176
    %v214 = vunpack.c.l.b16 %v177
    %v215 = vunpack.c.l.b16 %v178
    %v216 = vunpack.c.l.b16 %v179
    %v217 = vunpack.c.l.b16 %v180
    %v218 = vpack.c.b16 %v203, %v202
    %v219 = vpack.c.b16 %v205, %v204
    %v220 = vpack.c.b16 %v207, %v206
    %v221 = vpack.c.b16 %v209, %v208
    %v222 = vpack.c.b16 %v211, %v210
    %v223 = vpack.c.b16 %v213, %v212
    %v224 = vpack.c.b16 %v215, %v214
    %v225 = vpack.c.b16 %v217, %v216
    %234 = vmatpush.bf16.msra.mxu0 %v225
    %235 = vmatpush.bf16.msra.mxu0 %v224
    %236 = vmatpush.bf16.msra.mxu0 %v223
    %237 = vmatpush.bf16.msra.mxu0 %v222
    %238 = vmatpush.bf16.msra.mxu0 %v221
    %239 = vmatpush.bf16.msra.mxu0 %v220
    %240 = vmatpush.bf16.msra.mxu0 %v219
    %241 = vmatpush.bf16.msra.mxu0 %v218
    %242 = vmatmul.bf16.gmra.mxu0 %v163
    %v243 = vpop.f32.mrf.mxu0
    %v244 = vadd.f32 %v184, %v243
    %v245 = vpop.f32.mrf.mxu0
    %246 = vdwg.mxu0
    %vm247 = vcmp.ge.f32.partialorder %v244, 0.0
    %v248 = vmul.f32 %v244, 0.2
    %v249 = vsel %vm247, %v244, %v248
    %v250 = vmul.f32 %v249, 1.4142135
    %v251 = vpack.c.bf16 %v250, %v250
    %s252 = scalar_lea.vmem [#allocation5], 128
    %v253 = vld [vmem:[%s252] sm:$0xf]
    %v254 = vld [vmem:[%s252 + $0x4] sm:$0xf]
    %v255 = vld [vmem:[%s252 + $0x8] sm:$0xf]
    %v256 = vld [vmem:[%s252 + $0xc] sm:$0xf]
    %v257 = vld [vmem:[%s252 + $0x10] sm:$0xf]
    %v258 = vld [vmem:[%s252 + $0x14] sm:$0xf]
    %v259 = vld [vmem:[%s252 + $0x18] sm:$0xf]
    %v260 = vld [vmem:[%s252 + $0x1c] sm:$0xf]
    %v261 = vld [vmem:[%s252 + $0x20] sm:$0xf]
    %v262 = vld [vmem:[%s252 + $0x24] sm:$0xf]
    %v263 = vld [vmem:[%s252 + $0x28] sm:$0xf]
    %v264 = vld [vmem:[%s252 + $0x2c] sm:$0xf]
    %v265 = vld [vmem:[%s252 + $0x30] sm:$0xf]
    %v266 = vld [vmem:[%s252 + $0x34] sm:$0xf]
    %v267 = vld [vmem:[%s252 + $0x38] sm:$0xf]
    %v268 = vld [vmem:[%s252 + $0x3c] sm:$0xf]
    %s269 = scalar_lea.vmem [#allocation7], 2
    %v270 = vld [vmem:[%s269] sm:$0x1]
    %v272 = vperm.slane %v270, 0
    %v290 = vunpack.c.l.b16 %v253
    %v291 = vunpack.c.l.b16 %v254
    %v292 = vunpack.c.l.b16 %v255
    %v293 = vunpack.c.l.b16 %v256
    %v294 = vunpack.c.l.b16 %v257
    %v295 = vunpack.c.l.b16 %v258
    %v296 = vunpack.c.l.b16 %v259
    %v297 = vunpack.c.l.b16 %v260
    %v298 = vunpack.c.l.b16 %v261
    %v299 = vunpack.c.l.b16 %v262
    %v300 = vunpack.c.l.b16 %v263
    %v301 = vunpack.c.l.b16 %v264
    %v302 = vunpack.c.l.b16 %v265
    %v303 = vunpack.c.l.b16 %v266
    %v304 = vunpack.c.l.b16 %v267
    %v305 = vunpack.c.l.b16 %v268
    %v306 = vpack.c.b16 %v291, %v290
    %v307 = vpack.c.b16 %v293, %v292
    %v308 = vpack.c.b16 %v295, %v294
    %v309 = vpack.c.b16 %v297, %v296
    %v310 = vpack.c.b16 %v299, %v298
    %v311 = vpack.c.b16 %v301, %v300
    %v312 = vpack.c.b16 %v303, %v302
    %v313 = vpack.c.b16 %v305, %v304
    %322 = vmatpush.bf16.msra.mxu0 %v313
    %323 = vmatpush.bf16.msra.mxu0 %v312
    %324 = vmatpush.bf16.msra.mxu0 %v311
    %325 = vmatpush.bf16.msra.mxu0 %v310
    %326 = vmatpush.bf16.msra.mxu0 %v309
    %327 = vmatpush.bf16.msra.mxu0 %v308
    %328 = vmatpush.bf16.msra.mxu0 %v307
    %329 = vmatpush.bf16.msra.mxu0 %v306
    %330 = vmatmul.bf16.gmra.mxu0 %v251
    %v331 = vpop.f32.mrf.mxu0
    %v332 = vadd.f32 %v272, %v331
    %v333 = vpop.f32.mrf.mxu0
    %334 = vdwg.mxu0
    %vm335 = vcmp.ge.f32.partialorder %v332, 0.0
    %v336 = vmul.f32 %v332, 0.2
    %v337 = vsel %vm335, %v332, %v336
    %v338 = vmul.f32 %v337, 1.4142135
    %v339 = vpack.c.bf16 %v338, %v338
    %s340 = scalar_lea.vmem [#allocation5], 192
    %v341 = vld [vmem:[%s340] sm:$0xf]
    %v342 = vld [vmem:[%s340 + $0x4] sm:$0xf]
    %v343 = vld [vmem:[%s340 + $0x8] sm:$0xf]
    %v344 = vld [vmem:[%s340 + $0xc] sm:$0xf]
    %v345 = vld [vmem:[%s340 + $0x10] sm:$0xf]
    %v346 = vld [vmem:[%s340 + $0x14] sm:$0xf]
    %v347 = vld [vmem:[%s340 + $0x18] sm:$0xf]
    %v348 = vld [vmem:[%s340 + $0x1c] sm:$0xf]
    %v349 = vld [vmem:[%s340 + $0x20] sm:$0xf]
    %v350 = vld [vmem:[%s340 + $0x24] sm:$0xf]
    %v351 = vld [vmem:[%s340 + $0x28] sm:$0xf]
    %v352 = vld [vmem:[%s340 + $0x2c] sm:$0xf]
    %v353 = vld [vmem:[%s340 + $0x30] sm:$0xf]
    %v354 = vld [vmem:[%s340 + $0x34] sm:$0xf]
    %v355 = vld [vmem:[%s340 + $0x38] sm:$0xf]
    %v356 = vld [vmem:[%s340 + $0x3c] sm:$0xf]
    %s357 = scalar_lea.vmem [#allocation7], 3
    %v358 = vld [vmem:[%s357] sm:$0x1]
    %v360 = vperm.slane %v358, 0
    %v378 = vunpack.c.l.b16 %v341
    %v379 = vunpack.c.l.b16 %v342
    %v380 = vunpack.c.l.b16 %v343
    %v381 = vunpack.c.l.b16 %v344
    %v382 = vunpack.c.l.b16 %v345
    %v383 = vunpack.c.l.b16 %v346
    %v384 = vunpack.c.l.b16 %v347
    %v385 = vunpack.c.l.b16 %v348
    %v386 = vunpack.c.l.b16 %v349
    %v387 = vunpack.c.l.b16 %v350
    %v388 = vunpack.c.l.b16 %v351
    %v389 = vunpack.c.l.b16 %v352
    %v390 = vunpack.c.l.b16 %v353
    %v391 = vunpack.c.l.b16 %v354
    %v392 = vunpack.c.l.b16 %v355
    %v393 = vunpack.c.l.b16 %v356
    %v394 = vpack.c.b16 %v379, %v378
    %v395 = vpack.c.b16 %v381, %v380
    %v396 = vpack.c.b16 %v383, %v382
    %v397 = vpack.c.b16 %v385, %v384
    %v398 = vpack.c.b16 %v387, %v386
    %v399 = vpack.c.b16 %v389, %v388
    %v400 = vpack.c.b16 %v391, %v390
    %v401 = vpack.c.b16 %v393, %v392
    %410 = vmatpush.bf16.msra.mxu0 %v401
    %411 = vmatpush.bf16.msra.mxu0 %v400
    %412 = vmatpush.bf16.msra.mxu0 %v399
    %413 = vmatpush.bf16.msra.mxu0 %v398
    %414 = vmatpush.bf16.msra.mxu0 %v397
    %415 = vmatpush.bf16.msra.mxu0 %v396
    %416 = vmatpush.bf16.msra.mxu0 %v395
    %417 = vmatpush.bf16.msra.mxu0 %v394
    %418 = vmatmul.bf16.gmra.mxu0 %v339
    %v419 = vpop.f32.mrf.mxu0
    %v420 = vadd.f32 %v360, %v419
    %v421 = vpop.f32.mrf.mxu0
    %422 = vdwg.mxu0
    %vm423 = vcmp.ge.f32.partialorder %v420, 0.0
    %v424 = vmul.f32 %v420, 0.2
    %v425 = vsel %vm423, %v420, %v424
    %v426 = vmul.f32 %v425, 1.4142135
    %v427 = vpack.c.bf16 %v426, %v426
    %s428 = scalar_lea.vmem [#allocation5], 256
    %v429 = vld [vmem:[%s428] sm:$0xf]
    %v430 = vld [vmem:[%s428 + $0x4] sm:$0xf]
    %v431 = vld [vmem:[%s428 + $0x8] sm:$0xf]
    %v432 = vld [vmem:[%s428 + $0xc] sm:$0xf]
    %v433 = vld [vmem:[%s428 + $0x10] sm:$0xf]
    %v434 = vld [vmem:[%s428 + $0x14] sm:$0xf]
    %v435 = vld [vmem:[%s428 + $0x18] sm:$0xf]
    %v436 = vld [vmem:[%s428 + $0x1c] sm:$0xf]
    %v437 = vld [vmem:[%s428 + $0x20] sm:$0xf]
    %v438 = vld [vmem:[%s428 + $0x24] sm:$0xf]
    %v439 = vld [vmem:[%s428 + $0x28] sm:$0xf]
    %v440 = vld [vmem:[%s428 + $0x2c] sm:$0xf]
    %v441 = vld [vmem:[%s428 + $0x30] sm:$0xf]
    %v442 = vld [vmem:[%s428 + $0x34] sm:$0xf]
    %v443 = vld [vmem:[%s428 + $0x38] sm:$0xf]
    %v444 = vld [vmem:[%s428 + $0x3c] sm:$0xf]
    %s445 = scalar_lea.vmem [#allocation7], 4
    %v446 = vld [vmem:[%s445] sm:$0x1]
    %v448 = vperm.slane %v446, 0
    %v466 = vunpack.c.l.b16 %v429
    %v467 = vunpack.c.l.b16 %v430
    %v468 = vunpack.c.l.b16 %v431
    %v469 = vunpack.c.l.b16 %v432
    %v470 = vunpack.c.l.b16 %v433
    %v471 = vunpack.c.l.b16 %v434
    %v472 = vunpack.c.l.b16 %v435
    %v473 = vunpack.c.l.b16 %v436
    %v474 = vunpack.c.l.b16 %v437
    %v475 = vunpack.c.l.b16 %v438
    %v476 = vunpack.c.l.b16 %v439
    %v477 = vunpack.c.l.b16 %v440
    %v478 = vunpack.c.l.b16 %v441
    %v479 = vunpack.c.l.b16 %v442
    %v480 = vunpack.c.l.b16 %v443
    %v481 = vunpack.c.l.b16 %v444
    %v482 = vpack.c.b16 %v467, %v466
    %v483 = vpack.c.b16 %v469, %v468
    %v484 = vpack.c.b16 %v471, %v470
    %v485 = vpack.c.b16 %v473, %v472
    %v486 = vpack.c.b16 %v475, %v474
    %v487 = vpack.c.b16 %v477, %v476
    %v488 = vpack.c.b16 %v479, %v478
    %v489 = vpack.c.b16 %v481, %v480
    %498 = vmatpush.bf16.msra.mxu0 %v489
    %499 = vmatpush.bf16.msra.mxu0 %v488
    %500 = vmatpush.bf16.msra.mxu0 %v487
    %501 = vmatpush.bf16.msra.mxu0 %v486
    %502 = vmatpush.bf16.msra.mxu0 %v485
    %503 = vmatpush.bf16.msra.mxu0 %v484
    %504 = vmatpush.bf16.msra.mxu0 %v483
    %505 = vmatpush.bf16.msra.mxu0 %v482
    %506 = vmatmul.bf16.gmra.mxu0 %v427
    %v507 = vpop.f32.mrf.mxu0
    %v508 = vadd.f32 %v448, %v507
    %v509 = vpop.f32.mrf.mxu0
    %510 = vdwg.mxu0
    %vm511 = vcmp.ge.f32.partialorder %v508, 0.0
    %v512 = vmul.f32 %v508, 0.2
    %v513 = vsel %vm511, %v508, %v512
    %v514 = vmul.f32 %v513, 1.4142135
    %v515 = vpack.c.bf16 %v514, %v514
    %s516 = scalar_lea.vmem [#allocation5], 320
    %v517 = vld [vmem:[%s516] sm:$0xf]
    %v518 = vld [vmem:[%s516 + $0x4] sm:$0xf]
    %v519 = vld [vmem:[%s516 + $0x8] sm:$0xf]
    %v520 = vld [vmem:[%s516 + $0xc] sm:$0xf]
    %v521 = vld [vmem:[%s516 + $0x10] sm:$0xf]
    %v522 = vld [vmem:[%s516 + $0x14] sm:$0xf]
    %v523 = vld [vmem:[%s516 + $0x18] sm:$0xf]
    %v524 = vld [vmem:[%s516 + $0x1c] sm:$0xf]
    %v525 = vld [vmem:[%s516 + $0x20] sm:$0xf]
    %v526 = vld [vmem:[%s516 + $0x24] sm:$0xf]
    %v527 = vld [vmem:[%s516 + $0x28] sm:$0xf]
    %v528 = vld [vmem:[%s516 + $0x2c] sm:$0xf]
    %v529 = vld [vmem:[%s516 + $0x30] sm:$0xf]
    %v530 = vld [vmem:[%s516 + $0x34] sm:$0xf]
    %v531 = vld [vmem:[%s516 + $0x38] sm:$0xf]
    %v532 = vld [vmem:[%s516 + $0x3c] sm:$0xf]
    %s533 = scalar_lea.vmem [#allocation7], 5
    %v534 = vld [vmem:[%s533] sm:$0x1]
    %v536 = vperm.slane %v534, 0
    %v554 = vunpack.c.l.b16 %v517
    %v555 = vunpack.c.l.b16 %v518
    %v556 = vunpack.c.l.b16 %v519
    %v557 = vunpack.c.l.b16 %v520
    %v558 = vunpack.c.l.b16 %v521
    %v559 = vunpack.c.l.b16 %v522
    %v560 = vunpack.c.l.b16 %v523
    %v561 = vunpack.c.l.b16 %v524
    %v562 = vunpack.c.l.b16 %v525
    %v563 = vunpack.c.l.b16 %v526
    %v564 = vunpack.c.l.b16 %v527
    %v565 = vunpack.c.l.b16 %v528
    %v566 = vunpack.c.l.b16 %v529
    %v567 = vunpack.c.l.b16 %v530
    %v568 = vunpack.c.l.b16 %v531
    %v569 = vunpack.c.l.b16 %v532
    %v570 = vpack.c.b16 %v555, %v554
    %v571 = vpack.c.b16 %v557, %v556
    %v572 = vpack.c.b16 %v559, %v558
    %v573 = vpack.c.b16 %v561, %v560
    %v574 = vpack.c.b16 %v563, %v562
    %v575 = vpack.c.b16 %v565, %v564
    %v576 = vpack.c.b16 %v567, %v566
    %v577 = vpack.c.b16 %v569, %v568
    %586 = vmatpush.bf16.msra.mxu0 %v577
    %587 = vmatpush.bf16.msra.mxu0 %v576
    %588 = vmatpush.bf16.msra.mxu0 %v575
    %589 = vmatpush.bf16.msra.mxu0 %v574
    %590 = vmatpush.bf16.msra.mxu0 %v573
    %591 = vmatpush.bf16.msra.mxu0 %v572
    %592 = vmatpush.bf16.msra.mxu0 %v571
    %593 = vmatpush.bf16.msra.mxu0 %v570
    %594 = vmatmul.bf16.gmra.mxu0 %v515
    %v595 = vpop.f32.mrf.mxu0
    %v596 = vadd.f32 %v536, %v595
    %v597 = vpop.f32.mrf.mxu0
    %598 = vdwg.mxu0
    %vm599 = vcmp.ge.f32.partialorder %v596, 0.0
    %v600 = vmul.f32 %v596, 0.2
    %v601 = vsel %vm599, %v596, %v600
    %v602 = vmul.f32 %v601, 1.4142135
    %v603 = vpack.c.bf16 %v602, %v602
    %s604 = scalar_lea.vmem [#allocation5], 384
    %v605 = vld [vmem:[%s604] sm:$0xf]
    %v606 = vld [vmem:[%s604 + $0x4] sm:$0xf]
    %v607 = vld [vmem:[%s604 + $0x8] sm:$0xf]
    %v608 = vld [vmem:[%s604 + $0xc] sm:$0xf]
    %v609 = vld [vmem:[%s604 + $0x10] sm:$0xf]
    %v610 = vld [vmem:[%s604 + $0x14] sm:$0xf]
    %v611 = vld [vmem:[%s604 + $0x18] sm:$0xf]
    %v612 = vld [vmem:[%s604 + $0x1c] sm:$0xf]
    %v613 = vld [vmem:[%s604 + $0x20] sm:$0xf]
    %v614 = vld [vmem:[%s604 + $0x24] sm:$0xf]
    %v615 = vld [vmem:[%s604 + $0x28] sm:$0xf]
    %v616 = vld [vmem:[%s604 + $0x2c] sm:$0xf]
    %v617 = vld [vmem:[%s604 + $0x30] sm:$0xf]
    %v618 = vld [vmem:[%s604 + $0x34] sm:$0xf]
    %v619 = vld [vmem:[%s604 + $0x38] sm:$0xf]
    %v620 = vld [vmem:[%s604 + $0x3c] sm:$0xf]
    %s621 = scalar_lea.vmem [#allocation7], 6
    %v622 = vld [vmem:[%s621] sm:$0x1]
    %v624 = vperm.slane %v622, 0
    %v642 = vunpack.c.l.b16 %v605
    %v643 = vunpack.c.l.b16 %v606
    %v644 = vunpack.c.l.b16 %v607
    %v645 = vunpack.c.l.b16 %v608
    %v646 = vunpack.c.l.b16 %v609
    %v647 = vunpack.c.l.b16 %v610
    %v648 = vunpack.c.l.b16 %v611
    %v649 = vunpack.c.l.b16 %v612
    %v650 = vunpack.c.l.b16 %v613
    %v651 = vunpack.c.l.b16 %v614
    %v652 = vunpack.c.l.b16 %v615
    %v653 = vunpack.c.l.b16 %v616
    %v654 = vunpack.c.l.b16 %v617
    %v655 = vunpack.c.l.b16 %v618
    %v656 = vunpack.c.l.b16 %v619
    %v657 = vunpack.c.l.b16 %v620
    %v658 = vpack.c.b16 %v643, %v642
    %v659 = vpack.c.b16 %v645, %v644
    %v660 = vpack.c.b16 %v647, %v646
    %v661 = vpack.c.b16 %v649, %v648
    %v662 = vpack.c.b16 %v651, %v650
    %v663 = vpack.c.b16 %v653, %v652
    %v664 = vpack.c.b16 %v655, %v654
    %v665 = vpack.c.b16 %v657, %v656
    %674 = vmatpush.bf16.msra.mxu0 %v665
    %675 = vmatpush.bf16.msra.mxu0 %v664
    %676 = vmatpush.bf16.msra.mxu0 %v663
    %677 = vmatpush.bf16.msra.mxu0 %v662
    %678 = vmatpush.bf16.msra.mxu0 %v661
    %679 = vmatpush.bf16.msra.mxu0 %v660
    %680 = vmatpush.bf16.msra.mxu0 %v659
    %681 = vmatpush.bf16.msra.mxu0 %v658
    %682 = vmatmul.bf16.gmra.mxu0 %v603
    %v683 = vpop.f32.mrf.mxu0
    %v684 = vadd.f32 %v624, %v683
    %v685 = vpop.f32.mrf.mxu0
    %686 = vdwg.mxu0
    %vm687 = vcmp.ge.f32.partialorder %v684, 0.0
    %v688 = vmul.f32 %v684, 0.2
    %v689 = vsel %vm687, %v684, %v688
    %v690 = vmul.f32 %v689, 1.4142135
    %v691 = vpack.c.bf16 %v690, %v690
    %s692 = scalar_lea.vmem [#allocation5], 448
    %v693 = vld [vmem:[%s692] sm:$0xf]
    %v694 = vld [vmem:[%s692 + $0x4] sm:$0xf]
    %v695 = vld [vmem:[%s692 + $0x8] sm:$0xf]
    %v696 = vld [vmem:[%s692 + $0xc] sm:$0xf]
    %v697 = vld [vmem:[%s692 + $0x10] sm:$0xf]
    %v698 = vld [vmem:[%s692 + $0x14] sm:$0xf]
    %v699 = vld [vmem:[%s692 + $0x18] sm:$0xf]
    %v700 = vld [vmem:[%s692 + $0x1c] sm:$0xf]
    %v701 = vld [vmem:[%s692 + $0x20] sm:$0xf]
    %v702 = vld [vmem:[%s692 + $0x24] sm:$0xf]
    %v703 = vld [vmem:[%s692 + $0x28] sm:$0xf]
    %v704 = vld [vmem:[%s692 + $0x2c] sm:$0xf]
    %v705 = vld [vmem:[%s692 + $0x30] sm:$0xf]
    %v706 = vld [vmem:[%s692 + $0x34] sm:$0xf]
    %v707 = vld [vmem:[%s692 + $0x38] sm:$0xf]
    %v708 = vld [vmem:[%s692 + $0x3c] sm:$0xf]
    %s709 = scalar_lea.vmem [#allocation7], 7
    %v710 = vld [vmem:[%s709] sm:$0x1]
    %v712 = vperm.slane %v710, 0
    %v730 = vunpack.c.l.b16 %v693
    %v731 = vunpack.c.l.b16 %v694
    %v732 = vunpack.c.l.b16 %v695
    %v733 = vunpack.c.l.b16 %v696
    %v734 = vunpack.c.l.b16 %v697
    %v735 = vunpack.c.l.b16 %v698
    %v736 = vunpack.c.l.b16 %v699
    %v737 = vunpack.c.l.b16 %v700
    %v738 = vunpack.c.l.b16 %v701
    %v739 = vunpack.c.l.b16 %v702
    %v740 = vunpack.c.l.b16 %v703
    %v741 = vunpack.c.l.b16 %v704
    %v742 = vunpack.c.l.b16 %v705
    %v743 = vunpack.c.l.b16 %v706
    %v744 = vunpack.c.l.b16 %v707
    %v745 = vunpack.c.l.b16 %v708
    %v746 = vpack.c.b16 %v731, %v730
    %v747 = vpack.c.b16 %v733, %v732
    %v748 = vpack.c.b16 %v735, %v734
    %v749 = vpack.c.b16 %v737, %v736
    %v750 = vpack.c.b16 %v739, %v738
    %v751 = vpack.c.b16 %v741, %v740
    %v752 = vpack.c.b16 %v743, %v742
    %v753 = vpack.c.b16 %v745, %v744
    %762 = vmatpush.bf16.msra.mxu0 %v753
    %763 = vmatpush.bf16.msra.mxu0 %v752
    %764 = vmatpush.bf16.msra.mxu0 %v751
    %765 = vmatpush.bf16.msra.mxu0 %v750
    %766 = vmatpush.bf16.msra.mxu0 %v749
    %767 = vmatpush.bf16.msra.mxu0 %v748
    %768 = vmatpush.bf16.msra.mxu0 %v747
    %769 = vmatpush.bf16.msra.mxu0 %v746
    %770 = vmatmul.bf16.gmra.mxu0 %v691
    %v771 = vpop.f32.mrf.mxu0
    %v772 = vadd.f32 %v712, %v771
    %v773 = vpop.f32.mrf.mxu0
    %774 = vdwg.mxu0
    %vm775 = vcmp.ge.f32.partialorder %v772, 0.0
    %v776 = vmul.f32 %v772, 0.2
    %v777 = vsel %vm775, %v772, %v776
    %v778 = vmul.f32 %v777, 1.4142135
    %779 = vst [vmem:[#allocation8] sm:$0xff] %v778
    // Predicated region
    $region26: #{tpu_custom_call.1} parent=1 // pred_check
      _
    $region27: #{tpu_custom_call.1} parent=1 // pred_check_branch
      %781 = sbr.rel (0) target = $region29
    $region28: #{tpu_custom_call.1} parent=1 // pred_region
      %783 = vsyncadd [#allocation4], 0
      %s785 = sshll.u32 [#allocation8], 4
      %s786 = int_to_ptr.vmem [resolvable:$true] %s785
      %s787 = sshll.u32 %s3, 4
      %s788 = int_to_ptr.hbm [resolvable:$true] %s787
      %790 = dma.vmem_to_hbm [thread:$0]  %s786, 128, %s788, [#allocation4]
    $region29: #{tpu_custom_call.1} parent=1 // pred_fallthru
      _
    // Predicated region
    $region30: #{tpu_custom_call.1} parent=1 // pred_check
      _
    $region31: #{tpu_custom_call.1} parent=1 // pred_check_branch
      %792 = sbr.rel (0) target = $region33
    $region32: #{tpu_custom_call.1} parent=1 // pred_region
      %794 = dma.done [#allocation4], 128
    $region33: #{tpu_custom_call.1} parent=1 // pred_fallthru
      _
    %795 = vsyncpa [#allocation3], 1
    %796 = vsyncpa [#allocation6], 1
    %797 = vsyncpa [#allocation4], 1

</llo_original>
